<compile_context>
chip_gen: v7x
topology: tpu7x:2x2x1
jax: 0.10.0
libtpu: 0.0.40
codegen_flags: <defaults>
</compile_context>

<pallas_src>
import functools

import jax
import jax.numpy as jnp
from jax.experimental import pallas as pl
from jax.experimental.pallas import tpu as pltpu


SMOOTH = 1e-5


def _gdice_kernel(inp_ref, tgt_ref, out_ref, tacc_ref, pacc_ref, xacc_ref,
                  *, smooth, hw, tm, mask_last):
    n = pl.program_id(0)
    k = pl.program_id(1)
    is_first = jnp.logical_and(n == 0, k == 0)
    is_last = jnp.logical_and(n == pl.num_programs(0) - 1,
                              k == pl.num_programs(1) - 1)

    @pl.when(is_first)
    def _():
        tacc_ref[...] = jnp.zeros_like(tacc_ref)
        pacc_ref[...] = jnp.zeros_like(pacc_ref)
        xacc_ref[...] = jnp.zeros_like(xacc_ref)

    x = inp_ref[...].astype(jnp.float32)   # (C, tm)
    t = tgt_ref[...].astype(jnp.float32)   # (C, tm)  (target.float() in torch)

    if mask_last:
        # Zero out lanes past the true flattened-spatial extent on the ragged
        # last tile (zeros contribute nothing to any of the three sums).
        lane = jax.lax.broadcasted_iota(jnp.int32, x.shape, dimension=1)
        valid = (k * tm + lane) < hw
        x = jnp.where(valid, x, 0.0)
        t = jnp.where(valid, t, 0.0)

    # Lane-wide f32 partial sums: only elementwise adds in the hot loop.
    tacc_ref[...] += t          # -> per-channel sum(target)
    pacc_ref[...] += x * t      # -> per-channel sum(input * target)
    xacc_ref[...] += x          # -> per-channel sum(input)

    @pl.when(is_last)
    def _():
        tsum = jnp.sum(tacc_ref[...], axis=-1, keepdims=True)    # (C, 1)
        psum = jnp.sum(pacc_ref[...], axis=-1, keepdims=True)    # (C, 1)
        xsum = jnp.sum(xacc_ref[...], axis=-1, keepdims=True)    # (C, 1)
        w = 1.0 / jnp.maximum(tsum * tsum, smooth)               # class_weights
        intersect = jnp.sum(psum * w)
        denominator = jnp.maximum(jnp.sum((xsum + tsum) * w), smooth)
        out_ref[0, 0] = 1.0 - 2.0 * intersect / denominator


def gdice_loss_v2(net_output, gt, smooth=SMOOTH, max_tile_m=8192,
                  vmem_tile_budget_bytes=16 * 1024 * 1024):
    """Generalized Dice loss v2 (apply_nonlin=None). Accepts (N, C, *spatial)."""
    assert net_output.shape == gt.shape, "net_output / gt shape mismatch"
    N, C = net_output.shape[0], net_output.shape[1]
    hw = 1
    for d in net_output.shape[2:]:
        hw *= d

    # Free reshapes (no transpose, no pad, native dtypes preserved).
    inp = net_output.reshape(N, C, hw)
    tgt = gt.reshape(N, C, hw)

    # Lane tile size: as large as possible subject to a VMEM budget covering
    # the two double-buffered input tiles and the three f32 accumulators.
    bytes_per_lane = C * (2 * inp.dtype.itemsize + 2 * tgt.dtype.itemsize + 3 * 4)
    tm_cap = max(128, (vmem_tile_budget_bytes // bytes_per_lane) // 128 * 128)
    tm_cap = min(tm_cap, max_tile_m)

    if hw <= tm_cap:
        tm = hw                 # single full-extent tile (always layout-legal)
        n_tiles = 1
        mask_last = False
    else:
        tm = tm_cap             # multiple of 128
        n_tiles = pl.cdiv(hw, tm)
        mask_last = (hw % tm) != 0

    kernel = functools.partial(_gdice_kernel, smooth=smooth, hw=hw, tm=tm,
                               mask_last=mask_last)

    out = pl.pallas_call(
        kernel,
        out_shape=jax.ShapeDtypeStruct((1, 1), jnp.float32),
        grid_spec=pltpu.PrefetchScalarGridSpec(
            num_scalar_prefetch=0,
            grid=(N, n_tiles),
            in_specs=[
                pl.BlockSpec((None, C, tm), lambda n, k: (n, 0, k)),
                pl.BlockSpec((None, C, tm), lambda n, k: (n, 0, k)),
            ],
            out_specs=pl.BlockSpec(memory_space=pltpu.MemorySpace.SMEM),
            scratch_shapes=[
                pltpu.VMEM((C, tm), jnp.float32),   # sum(target) partials
                pltpu.VMEM((C, tm), jnp.float32),   # sum(input*target) partials
                pltpu.VMEM((C, tm), jnp.float32),   # sum(input) partials
            ],
        ),
        compiler_params=pltpu.CompilerParams(
            dimension_semantics=("arbitrary", "arbitrary"),  # both reduction axes
            vmem_limit_bytes=32 * 1024 * 1024,
        ),
    )(inp, tgt)
    return out[0, 0]


def gdice_loss_v2_ref(net_output, gt, smooth=SMOOTH):
    """Pure-JAX reference matching the PyTorch module."""
    N, C = net_output.shape[0], net_output.shape[1]
    inp = net_output.reshape(N, C, -1).astype(jnp.float32)
    tgt = gt.reshape(N, C, -1).astype(jnp.float32)
    target_sum = tgt.sum(axis=(0, 2))
    class_weights = 1.0 / jnp.maximum(target_sum * target_sum, smooth)
    intersect = ((inp * tgt).sum(axis=(0, 2)) * class_weights).sum()
    denominator = jnp.maximum(((inp + tgt).sum(axis=(0, 2)) * class_weights).sum(),
                              smooth)
    return 1.0 - 2.0 * intersect / denominator


if __name__ == "__main__":
    key = jax.random.PRNGKey(0)
    k1, k2 = jax.random.split(key)

    N, C, H, W = 2, 4, 16, 16
    # net_output: softmax-like probabilities over the channel axis
    logits = jax.random.normal(k1, (N, C, H, W), dtype=jnp.float32)
    net_output = jax.nn.softmax(logits, axis=1)
    # gt: one-hot ground truth over the channel axis
    labels = jax.random.randint(k2, (N, H, W), 0, C)
    gt = jnp.transpose(jax.nn.one_hot(labels, C, dtype=jnp.float32),
                       (0, 3, 1, 2))                       # (N, C, H, W)

    loss = jax.block_until_ready(gdice_loss_v2(net_output, gt))
    loss_ref = jax.block_until_ready(gdice_loss_v2_ref(net_output, gt))

    assert jnp.allclose(loss, loss_ref, atol=1e-5, rtol=1e-5), (loss, loss_ref)
    print("KERNEL_OK")
</pallas_src>

<mosaic_0001>
module attributes {stable_mosaic.version = 11 : i64} {
  func.func @_gdice_kernel(%arg0: i32, %arg1: i32, %arg2: memref<1x4x256xf32, #tpu.memory_space<vmem>>, %arg3: memref<1x4x256xf32, #tpu.memory_space<vmem>>, %arg4: memref<1x1xf32, #tpu.memory_space<smem>>, %arg5: memref<4x256xf32, #tpu.memory_space<vmem>>, %arg6: memref<4x256xf32, #tpu.memory_space<vmem>>, %arg7: memref<4x256xf32, #tpu.memory_space<vmem>>) attributes {dimension_semantics = [#tpu.dimension_semantics<arbitrary>, #tpu.dimension_semantics<arbitrary>], iteration_bounds = array<i64: 2, 1>, scalar_prefetch = 0 : i64, scratch_operands = 3 : i64, tpu.core_type = #tpu.core_type<tc>, window_params = [{transform_indices = @transform_0, window_bounds = array<i64: 1, 4, 256>}, {transform_indices = @transform_1, window_bounds = array<i64: 1, 4, 256>}, {transform_indices = @transform_2, window_bounds = array<i64: 1, 1>}]} {
    %c0_i32 = arith.constant 0 : i32
    %0 = arith.cmpi eq, %arg0, %c0_i32 : i32
    %c0_i32_0 = arith.constant 0 : i32
    %1 = arith.cmpi eq, %arg1, %c0_i32_0 : i32
    %2 = arith.andi %0, %1 : i1
    %c1_i32 = arith.constant 1 : i32
    %3 = arith.cmpi eq, %arg0, %c1_i32 : i32
    %c0_i32_1 = arith.constant 0 : i32
    %4 = arith.cmpi eq, %arg1, %c0_i32_1 : i32
    %5 = arith.andi %3, %4 : i1
    %6 = arith.extui %2 : i1 to i32
    %c0_i32_2 = arith.constant 0 : i32
    %7 = arith.cmpi ne, %6, %c0_i32_2 : i32
    scf.if %7 {
      %cst = arith.constant 0.000000e+00 : f32
      %24 = vector.broadcast %cst : f32 to vector<4x256xf32>
      %c0_21 = arith.constant 0 : index
      %c0_22 = arith.constant 0 : index
      %25 = vector.load %arg5[%c0_21, %c0_22] : memref<4x256xf32, #tpu.memory_space<vmem>>, vector<4x256xf32>
      tpu.vector_store %arg5[%c0_21, %c0_22], %24 {strides = array<i32>} : memref<4x256xf32, #tpu.memory_space<vmem>>, vector<4x256xf32>,
      %cst_23 = arith.constant 0.000000e+00 : f32
      %26 = vector.broadcast %cst_23 : f32 to vector<4x256xf32>
      %c0_24 = arith.constant 0 : index
      %c0_25 = arith.constant 0 : index
      %27 = vector.load %arg6[%c0_24, %c0_25] : memref<4x256xf32, #tpu.memory_space<vmem>>, vector<4x256xf32>
      tpu.vector_store %arg6[%c0_24, %c0_25], %26 {strides = array<i32>} : memref<4x256xf32, #tpu.memory_space<vmem>>, vector<4x256xf32>,
      %cst_26 = arith.constant 0.000000e+00 : f32
      %28 = vector.broadcast %cst_26 : f32 to vector<4x256xf32>
      %c0_27 = arith.constant 0 : index
      %c0_28 = arith.constant 0 : index
      %29 = vector.load %arg7[%c0_27, %c0_28] : memref<4x256xf32, #tpu.memory_space<vmem>>, vector<4x256xf32>
      tpu.vector_store %arg7[%c0_27, %c0_28], %28 {strides = array<i32>} : memref<4x256xf32, #tpu.memory_space<vmem>>, vector<4x256xf32>,
    } else {
    }
    %c0 = arith.constant 0 : index
    %c0_3 = arith.constant 0 : index
    %c0_4 = arith.constant 0 : index
    %8 = vector.load %arg2[%c0, %c0_3, %c0_4] : memref<1x4x256xf32, #tpu.memory_space<vmem>>, vector<1x4x256xf32>
    %9 = vector.shape_cast %8 : vector<1x4x256xf32> to vector<4x256xf32>
    %c0_5 = arith.constant 0 : index
    %c0_6 = arith.constant 0 : index
    %c0_7 = arith.constant 0 : index
    %10 = vector.load %arg3[%c0_5, %c0_6, %c0_7] : memref<1x4x256xf32, #tpu.memory_space<vmem>>, vector<1x4x256xf32>
    %11 = vector.shape_cast %10 : vector<1x4x256xf32> to vector<4x256xf32>
    %c0_8 = arith.constant 0 : index
    %c0_9 = arith.constant 0 : index
    %12 = vector.load %arg5[%c0_8, %c0_9] : memref<4x256xf32, #tpu.memory_space<vmem>>, vector<4x256xf32>
    %13 = arith.addf %12, %11 : vector<4x256xf32>
    %c0_10 = arith.constant 0 : index
    %c0_11 = arith.constant 0 : index
    %14 = vector.load %arg5[%c0_10, %c0_11] : memref<4x256xf32, #tpu.memory_space<vmem>>, vector<4x256xf32>
    tpu.vector_store %arg5[%c0_10, %c0_11], %13 {strides = array<i32>} : memref<4x256xf32, #tpu.memory_space<vmem>>, vector<4x256xf32>,
    %c0_12 = arith.constant 0 : index
    %c0_13 = arith.constant 0 : index
    %15 = vector.load %arg6[%c0_12, %c0_13] : memref<4x256xf32, #tpu.memory_space<vmem>>, vector<4x256xf32>
    %16 = arith.mulf %9, %11 : vector<4x256xf32>
    %17 = arith.addf %15, %16 : vector<4x256xf32>
    %c0_14 = arith.constant 0 : index
    %c0_15 = arith.constant 0 : index
    %18 = vector.load %arg6[%c0_14, %c0_15] : memref<4x256xf32, #tpu.memory_space<vmem>>, vector<4x256xf32>
    tpu.vector_store %arg6[%c0_14, %c0_15], %17 {strides = array<i32>} : memref<4x256xf32, #tpu.memory_space<vmem>>, vector<4x256xf32>,
    %c0_16 = arith.constant 0 : index
    %c0_17 = arith.constant 0 : index
    %19 = vector.load %arg7[%c0_16, %c0_17] : memref<4x256xf32, #tpu.memory_space<vmem>>, vector<4x256xf32>
    %20 = arith.addf %19, %9 : vector<4x256xf32>
    %c0_18 = arith.constant 0 : index
    %c0_19 = arith.constant 0 : index
    %21 = vector.load %arg7[%c0_18, %c0_19] : memref<4x256xf32, #tpu.memory_space<vmem>>, vector<4x256xf32>
    tpu.vector_store %arg7[%c0_18, %c0_19], %20 {strides = array<i32>} : memref<4x256xf32, #tpu.memory_space<vmem>>, vector<4x256xf32>,
    %22 = arith.extui %5 : i1 to i32
    %c0_i32_20 = arith.constant 0 : i32
    %23 = arith.cmpi ne, %22, %c0_i32_20 : i32
    scf.if %23 {
      %c0_21 = arith.constant 0 : index
      %c0_22 = arith.constant 0 : index
      %24 = vector.load %arg5[%c0_21, %c0_22] : memref<4x256xf32, #tpu.memory_space<vmem>>, vector<4x256xf32>
      %cst = arith.constant dense<0.000000e+00> : vector<4xf32>
      %25 = vector.multi_reduction <add>, %24, %cst [1] : vector<4x256xf32> to vector<4xf32>
      %26 = vector.shape_cast %25 : vector<4xf32> to vector<4x1xf32>
      %c0_23 = arith.constant 0 : index
      %c0_24 = arith.constant 0 : index
      %27 = vector.load %arg6[%c0_23, %c0_24] : memref<4x256xf32, #tpu.memory_space<vmem>>, vector<4x256xf32>
      %cst_25 = arith.constant dense<0.000000e+00> : vector<4xf32>
      %28 = vector.multi_reduction <add>, %27, %cst_25 [1] : vector<4x256xf32> to vector<4xf32>
      %29 = vector.shape_cast %28 : vector<4xf32> to vector<4x1xf32>
      %c0_26 = arith.constant 0 : index
      %c0_27 = arith.constant 0 : index
      %30 = vector.load %arg7[%c0_26, %c0_27] : memref<4x256xf32, #tpu.memory_space<vmem>>, vector<4x256xf32>
      %cst_28 = arith.constant dense<0.000000e+00> : vector<4xf32>
      %31 = vector.multi_reduction <add>, %30, %cst_28 [1] : vector<4x256xf32> to vector<4xf32>
      %32 = vector.shape_cast %31 : vector<4xf32> to vector<4x1xf32>
      %33 = arith.mulf %26, %26 : vector<4x1xf32>
      %cst_29 = arith.constant 9.99999974E-6 : f32
      %34 = vector.broadcast %cst_29 : f32 to vector<4x1xf32>
      %35 = arith.maximumf %33, %34 : vector<4x1xf32>
      %cst_30 = arith.constant 1.000000e+00 : f32
      %36 = vector.broadcast %cst_30 : f32 to vector<4x1xf32>
      %37 = arith.divf %36, %35 : vector<4x1xf32>
      %38 = arith.mulf %29, %37 : vector<4x1xf32>
      %39 = vector.shape_cast %38 : vector<4x1xf32> to vector<1x4x1xf32>
      %cst_31 = arith.constant dense<0.000000e+00> : vector<1xf32>
      %40 = vector.multi_reduction <add>, %39, %cst_31 [1, 2] : vector<1x4x1xf32> to vector<1xf32>
      %41 = vector.shape_cast %40 : vector<1xf32> to vector<1x1x1xf32>
      %42 = vector.extract %41[0, 0, 0] : f32 from vector<1x1x1xf32>
      %43 = arith.addf %32, %26 : vector<4x1xf32>
      %44 = arith.mulf %43, %37 : vector<4x1xf32>
      %45 = vector.shape_cast %44 : vector<4x1xf32> to vector<1x4x1xf32>
      %cst_32 = arith.constant dense<0.000000e+00> : vector<1xf32>
      %46 = vector.multi_reduction <add>, %45, %cst_32 [1, 2] : vector<1x4x1xf32> to vector<1xf32>
      %47 = vector.shape_cast %46 : vector<1xf32> to vector<1x1x1xf32>
      %48 = vector.extract %47[0, 0, 0] : f32 from vector<1x1x1xf32>
      %cst_33 = arith.constant 9.99999974E-6 : f32
      %49 = arith.maximumf %48, %cst_33 : f32
      %cst_34 = arith.constant 2.000000e+00 : f32
      %50 = arith.mulf %cst_34, %42 : f32
      %51 = arith.divf %50, %49 : f32
      %cst_35 = arith.constant 1.000000e+00 : f32
      %52 = arith.subf %cst_35, %51 : f32
      %c0_36 = arith.constant 0 : index
      %c0_37 = arith.constant 0 : index
      %53 = memref.load %arg4[%c0_36, %c0_37] : memref<1x1xf32, #tpu.memory_space<smem>>
      memref.store %52, %arg4[%c0_36, %c0_37] : memref<1x1xf32, #tpu.memory_space<smem>>
    } else {
    }
    return
  }
  func.func @transform_0(%arg0: i32, %arg1: i32) -> (i32, i32, i32) {
    %c0_i32 = arith.constant 0 : i32
    %c0_i32_0 = arith.constant 0 : i32
    return %arg0, %c0_i32, %arg1 : i32, i32, i32
  }
  func.func @transform_1(%arg0: i32, %arg1: i32) -> (i32, i32, i32) {
    %c0_i32 = arith.constant 0 : i32
    %c0_i32_0 = arith.constant 0 : i32
    return %arg0, %c0_i32, %arg1 : i32, i32, i32
  }
  func.func @transform_2(%arg0: i32, %arg1: i32) -> (i32, i32) {
    %c0_i32 = arith.constant 0 : i32
    %c0_i32_0 = arith.constant 0 : i32
    %c0_i32_1 = arith.constant 0 : i32
    return %c0_i32, %c0_i32_0 : i32, i32
  }
}

</mosaic_0001>

<llo_original>
// kernel: tpu_custom_call.1
$region0: #{tpu_custom_call.1}
  #allocation0 [shape = 'u32[]', space=smem, size = 0x4, offset = 0x4, fixed_abs, tag = 'smem constant byte address 0x4 - core index']
  #allocation1 [shape = 'u32[144,128]{1,0:T(1,128)}', space=vmem, size = 0x12000, scoped, tag = 'internal scratch']
  #allocation2 [shape = 'f32[4,256]{1,0:T(4,128)}', space=vmem, size = 0x1000, scoped, tag = 'scratch operand']
  #allocation3 [shape = 'f32[4,256]{1,0:T(4,128)}', space=vmem, size = 0x1000, scoped, tag = 'scratch operand']
  #allocation4 [shape = 'f32[4,256]{1,0:T(4,128)}', space=vmem, size = 0x1000, scoped, tag = 'scratch operand']
  %s0 = inlined_call_operand.hbm [shape: f32[2,4,256], index: 0, kind: input, shape index: {}]
  %s1 = inlined_call_operand.hbm [shape: f32[2,4,256], index: 1, kind: input, shape index: {}]
  %s2 = inlined_call_operand.hbm [shape: f32[1,1], index: 2, kind: output, shape index: {}]
  %s3 = sld [smem:[#allocation0]]
  $region57: #{tpu_custom_call.1} parent=0
    _
  %s5 = ssub.s32 1, %s3
  %s6 = scalar_select 0, %s5, %s3
  $region1: #{tpu_custom_call.1} parent=0
    #allocation5 [shape = 'u8[8192]{0}', space=vmem, size = 0x2000, scoped, tag = 'input window, operand 0']
    #allocation6 [shape = 's32[2]{0}', space=sflag, size = 0x8, scoped, tag = 'scoped memory for tpu_custom_call.1']
    #allocation7 [shape = 's32[2]{0}', space=sflag, size = 0x8, scoped, tag = 'scoped memory for tpu_custom_call.1']
    #allocation8 [shape = 'u8[8192]{0}', space=vmem, size = 0x2000, scoped, tag = 'input window, operand 1']
    #allocation9 [shape = 's32[2]{0}', space=sflag, size = 0x8, scoped, tag = 'scoped memory for tpu_custom_call.1']
    #allocation10 [shape = 'u8[512]{0}', space=smem, size = 0x200, scoped, tag = 'output window, operand 0, single buffered']
    %7 = vsyncpa [#allocation6], 0
    %s8 = scalar_lea.sflag [#allocation6], 1
    %9 = vsyncpa %s8, 0
    %10 = vsyncpa [#allocation9], 0
    %s11 = scalar_lea.sflag [#allocation9], 1
    %12 = vsyncpa %s11, 0
    %13 = vsyncpa [#allocation7], 0
    loop: start=0, step=1, limit=4
    $region2: #{tpu_custom_call.1} parent=1 // loop_pre_header
      _
    $region3: #{tpu_custom_call.1} parent=1 // loop_header
      %s15 = sphi 0, %s19
      %p16 = scmp.ge.s32.totalorder %s15, 4
      %s22 = sphi 0, %s34
      %s23 = sphi 0, %s30
      %s24 = sphi 0, %s22
      %s25 = sphi 0, %s23
      %s26 = sphi 0, %s24
      %s27 = sphi 0, %s25
      %s39 = sphi 0, %s41
      %s42 = sphi 0, %s39
      %s43 = sphi 0, %s42
      %s59 = sphi 0, %s43
      %s67 = sphi 0, %s69
      %s70 = sphi 0, %s67
      %s71 = sphi 0, %s70
      %s87 = sphi 0, %s71
      %s91 = sphi 0, %s91
      %s93 = sphi 0, %s91
      %s94 = sphi 0, %s93
      %s108 = sphi 0, %s94
    $region4: #{tpu_custom_call.1} parent=1 // loop_header_branch
      %18 = sbr.rel (%p16) target = $region8
    $region5: #{tpu_custom_call.1} parent=1 // loop_body
      %s20 = ssub.s32 %s15, 1
      %s21 = ssub.s32 %s15, 2
      %s28 = sadd.s32 1, %s23
      %p29 = scmp.ge.s32.totalorder %s28, 1
      %s30 = scalar_select %p29, 0, %s28
      %s31 = sadd.s32 1, %s22
      %s32 = scalar_select %p29, %s31, %s22
      %p33 = scmp.ge.s32.totalorder %s32, 2
      %s34 = scalar_select %p33, 0, %s32
      %s35 = ssub.s32 %s22, %s34
      %s36 = ssub.s32 %s23, %s30
      %s37 = sor.u32 %s35, %s36
      %p38 = scmp.eq.s32.totalorder %s37, 0
      %s40 = sadd.s32 %s39, 1
      %s41 = scalar_select %p38, %s39, %s40
      %p44 = pneg %p38
      %p45 = scmp.eq.s32.totalorder %s15, 1
      %p46 = por %p44, %p45
      %p47 = scmp.ne.s32.totalorder %s39, %s42
      %p48 = scmp.eq.s32.totalorder %s15, 0
      %p49 = por %p47, %p48
      %p50 = scmp.ne.s32.totalorder %s39, %s42
      %p51 = scmp.eq.s32.totalorder %s20, 1
      %p52 = por %p50, %p51
      %p53 = scmp.ne.s32.totalorder %s42, %s43
      %p54 = scmp.eq.s32.totalorder %s20, 0
      %p55 = por %p53, %p54
      %p56 = scmp.ne.s32.totalorder %s42, %s43
      %p57 = scmp.eq.s32.totalorder %s21, 1
      %p58 = por %p56, %p57
      %p60 = scmp.ne.s32.totalorder %s43, %s59
      %p61 = scmp.eq.s32.totalorder %s21, 0
      %p62 = por %p60, %p61
      %s63 = ssub.s32 %s22, %s34
      %s64 = ssub.s32 %s23, %s30
      %s65 = sor.u32 %s63, %s64
      %p66 = scmp.eq.s32.totalorder %s65, 0
      %s68 = sadd.s32 %s67, 1
      %s69 = scalar_select %p66, %s67, %s68
      %p72 = pneg %p66
      %p73 = scmp.eq.s32.totalorder %s15, 1
      %p74 = por %p72, %p73
      %p75 = scmp.ne.s32.totalorder %s67, %s70
      %p76 = scmp.eq.s32.totalorder %s15, 0
      %p77 = por %p75, %p76
      %p78 = scmp.ne.s32.totalorder %s67, %s70
      %p79 = scmp.eq.s32.totalorder %s20, 1
      %p80 = por %p78, %p79
      %p81 = scmp.ne.s32.totalorder %s70, %s71
      %p82 = scmp.eq.s32.totalorder %s20, 0
      %p83 = por %p81, %p82
      %p84 = scmp.ne.s32.totalorder %s70, %s71
      %p85 = scmp.eq.s32.totalorder %s21, 1
      %p86 = por %p84, %p85
      %p88 = scmp.ne.s32.totalorder %s71, %s87
      %p89 = scmp.eq.s32.totalorder %s21, 0
      %p90 = por %p88, %p89
      %s92 = sadd.s32 %s91, 1
      %p95 = scmp.eq.s32.totalorder %s15, 1
      %p96 = scmp.ne.s32.totalorder %s91, %s93
      %p97 = scmp.eq.s32.totalorder %s15, 0
      %p98 = por %p96, %p97
      %p99 = scmp.ne.s32.totalorder %s91, %s93
      %p100 = scmp.eq.s32.totalorder %s20, 1
      %p101 = por %p99, %p100
      %p102 = scmp.ne.s32.totalorder %s93, %s94
      %p103 = scmp.eq.s32.totalorder %s20, 0
      %p104 = por %p102, %p103
      %p105 = scmp.ne.s32.totalorder %s93, %s94
      %p106 = scmp.eq.s32.totalorder %s21, 1
      %p107 = por %p105, %p106
      %p109 = scmp.ne.s32.totalorder %s94, %s108
      %p110 = scmp.eq.s32.totalorder %s21, 0
      %p111 = por %p109, %p110
      %p112 = scmp.le.s32.totalorder 1, %s15
      %p113 = scmp.lt.s32.totalorder %s15, 3
      %p114 = pnand %p112, %p113
      %p115 = pneg %p114
      // Predicated region
      $region9: #{tpu_custom_call.1} parent=5 // pred_check
        _
      $region10: #{tpu_custom_call.1} parent=5 // pred_check_branch
        %117 = sbr.rel (%p114) target = $region12
      $region11: #{tpu_custom_call.1} parent=5 // pred_region
        %s118 = ssub.s32 %s15, 1
      $region12: #{tpu_custom_call.1} parent=5 // pred_fallthru
        _
      %p119 = scmp.lt.s32.totalorder %s15, 2
      // Predicated region
      $region13: #{tpu_custom_call.1} parent=5 // pred_check
        %p120 = pneg %p119
      $region14: #{tpu_custom_call.1} parent=5 // pred_check_branch
        %122 = sbr.rel (%p120) target = $region16
      $region15: #{tpu_custom_call.1} parent=5 // pred_region
        // Predicated region
        $region17: #{tpu_custom_call.1} parent=15 // pred_check
          %p123 = pneg %p49
        $region18: #{tpu_custom_call.1} parent=15 // pred_check_branch
          %125 = sbr.rel (%p123) target = $region20
        $region19: #{tpu_custom_call.1} parent=15 // pred_region
          %s126 = sand.u32 %s39, 1
          %s127 = scalar_lea.sflag [#allocation6], %s126
          %s128 = sand.u32 %s39, 1
          %s129 = smul.addr %s128, 8
          %s130 = scalar_lea.vmem [#allocation5], %s129
          %s131 = smul.u32 2, %s23
          %s133 = ssub.s32 128, 128
          %134 = vsyncadd %s127, %s133
          %s135 = smul.addr %s22, 2
          %s136 = sadd.s32 %s131, %s135
          %s137 = smul.addr %s136, 64
          %s138 = scalar_lea.hbm %s0, %s137
          %s140 = sshll.u32 %s130, 4
          %s141 = int_to_ptr.vmem [resolvable:$true] %s140
          %143 = dma.hbm_to_vmem [thread:$0]  %s138, 128, %s141, %s127
        $region20: #{tpu_custom_call.1} parent=15 // pred_fallthru
          _
        // Predicated region
        $region21: #{tpu_custom_call.1} parent=15 // pred_check
          %p144 = pneg %p77
        $region22: #{tpu_custom_call.1} parent=15 // pred_check_branch
          %146 = sbr.rel (%p144) target = $region24
        $region23: #{tpu_custom_call.1} parent=15 // pred_region
          %s147 = sand.u32 %s67, 1
          %s148 = scalar_lea.sflag [#allocation9], %s147
          %s149 = sand.u32 %s67, 1
          %s150 = smul.addr %s149, 8
          %s151 = scalar_lea.vmem [#allocation8], %s150
          %s152 = smul.u32 2, %s23
          %s154 = ssub.s32 128, 128
          %155 = vsyncadd %s148, %s154
          %s156 = smul.addr %s22, 2
          %s157 = sadd.s32 %s152, %s156
          %s158 = smul.addr %s157, 64
          %s159 = scalar_lea.hbm %s1, %s158
          %s161 = sshll.u32 %s151, 4
          %s162 = int_to_ptr.vmem [resolvable:$true] %s161
          %164 = dma.hbm_to_vmem [thread:$0]  %s159, 128, %s162, %s148
        $region24: #{tpu_custom_call.1} parent=15 // pred_fallthru
          _
      $region16: #{tpu_custom_call.1} parent=5 // pred_fallthru
        _
      %p165 = scmp.le.s32.totalorder 1, %s15
      %p166 = scmp.lt.s32.totalorder %s15, 3
      %p167 = pnand %p165, %p166
      %p168 = pneg %p167
      // Predicated region
      $region25: #{tpu_custom_call.1} parent=5 // pred_check
        _
      $region26: #{tpu_custom_call.1} parent=5 // pred_check_branch
        %170 = sbr.rel (%p167) target = $region28
      $region27: #{tpu_custom_call.1} parent=5 // pred_region
        %s171 = ssub.s32 %s15, 1
        %s172 = sand.u32 %s42, 1
        %s173 = scalar_lea.sflag [#allocation6], %s172
        %s174 = sand.u32 %s42, 1
        %s175 = smul.addr %s174, 8
        %s176 = scalar_lea.vmem [#allocation5], %s175
        // Predicated region
        $region29: #{tpu_custom_call.1} parent=27 // pred_check
          %p177 = pneg %p55
        $region30: #{tpu_custom_call.1} parent=27 // pred_check_branch
          %179 = sbr.rel (%p177) target = $region32
        $region31: #{tpu_custom_call.1} parent=27 // pred_region
          %180 = dma.done %s173, 128
        $region32: #{tpu_custom_call.1} parent=27 // pred_fallthru
          _
        %s181 = sand.u32 %s70, 1
        %s182 = scalar_lea.sflag [#allocation9], %s181
        %s183 = sand.u32 %s70, 1
        %s184 = smul.addr %s183, 8
        %s185 = scalar_lea.vmem [#allocation8], %s184
        // Predicated region
        $region33: #{tpu_custom_call.1} parent=27 // pred_check
          %p186 = pneg %p83
        $region34: #{tpu_custom_call.1} parent=27 // pred_check_branch
          %188 = sbr.rel (%p186) target = $region36
        $region35: #{tpu_custom_call.1} parent=27 // pred_region
          %189 = dma.done %s182, 128
        $region36: #{tpu_custom_call.1} parent=27 // pred_fallthru
          _
        %s190 = sand.u32 %s42, 1
        %s191 = scalar_lea.sflag [#allocation6], %s190
        %s192 = sand.u32 %s42, 1
        %s193 = smul.addr %s192, 8
        %s194 = scalar_lea.vmem [#allocation5], %s193
        %p195 = pneg %p55
        %p196 = pneg %p52
        %s197 = sand.u32 %s70, 1
        %s198 = scalar_lea.sflag [#allocation9], %s197
        %s199 = sand.u32 %s70, 1
        %s200 = smul.addr %s199, 8
        %s201 = scalar_lea.vmem [#allocation8], %s200
        %p202 = pneg %p83
        %p203 = pneg %p80
        %p204 = pneg %p104
        %p205 = pneg %p101
        %s206 = smul.u32 2, %s25
        %s207 = smul.u32 2, %s25
        %p208 = scmp.eq.s32.totalorder %s24, 0
        %p209 = scmp.eq.s32.totalorder %s25, 0
        %p210 = pnand %p208, %p209
        %p211 = pneg %p210
        %p212 = scmp.eq.s32.totalorder %s24, 1
        %p213 = pnand %p212, %p209
        %p214 = pneg %p213
        // Predicated region
        $region37: #{tpu_custom_call.1} parent=27 // pred_check
          _
        $region38: #{tpu_custom_call.1} parent=27 // pred_check_branch
          %216 = sbr.rel (%p210) target = $region40
        $region39: #{tpu_custom_call.1} parent=27 // pred_region
          %217 = vst [vmem:[#allocation2] sm:$0xff] 0.0
          %218 = vst [vmem:[#allocation3] sm:$0xff] 0.0
          %219 = vst [vmem:[#allocation4] sm:$0xff] 0.0
        $region40: #{tpu_custom_call.1} parent=27 // pred_fallthru
          _
        %v220 = vld [vmem:[%s176] sm:$0xff]
        %v221 = vld [vmem:[%s185] sm:$0xff]
        %v222 = vld [vmem:[#allocation2] sm:$0xff]
        %v223 = vadd.f32 %v222, %v221
        %224 = vst [vmem:[#allocation2] sm:$0xff] %v223
        %v225 = vld [vmem:[#allocation3] sm:$0xff]
        %v226 = vmul.f32 %v220, %v221
        %v227 = vadd.f32 %v225, %v226
        %228 = vst [vmem:[#allocation3] sm:$0xff] %v227
        %v229 = vld [vmem:[#allocation4] sm:$0xff]
        %v230 = vadd.f32 %v229, %v220
        %231 = vst [vmem:[#allocation4] sm:$0xff] %v230
        // Predicated region
        $region41: #{tpu_custom_call.1} parent=27 // pred_check
          _
        $region42: #{tpu_custom_call.1} parent=27 // pred_check_branch
          %233 = sbr.rel (%p213) target = $region44
        $region43: #{tpu_custom_call.1} parent=27 // pred_region
          %v234 = vld [vmem:[#allocation2] sm:$0xff]
          %v236 = vcombine.high %v234, %v234
          %vm238 = vcmask 1043456
          %v239 = vsel %vm238, %v234, 0.0
          %v240 = vsel %vm238, %v236, 0.0
          %v241 = vadd.f32 %v239, %v240
          %242 = vadd.xlane.f32.xlu0 %v241
          %v243 = vpop.xlane.xlu0 %242
          %v244 = vld [vmem:[#allocation3] sm:$0xff]
          %v246 = vcombine.high %v244, %v244
          %v248 = vsel %vm238, %v244, 0.0
          %v249 = vsel %vm238, %v246, 0.0
          %v250 = vadd.f32 %v248, %v249
          %251 = vadd.xlane.f32.xlu0 %v250
          %v252 = vpop.xlane.xlu0 %251
          %v253 = vld [vmem:[#allocation4] sm:$0xff]
          %v255 = vcombine.high %v253, %v253
          %v257 = vsel %vm238, %v253, 0.0
          %v258 = vsel %vm238, %v255, 0.0
          %v259 = vadd.f32 %v257, %v258
          %260 = vadd.xlane.f32.xlu0 %v259
          %v261 = vpop.xlane.xlu0 %260
          %v262 = vmul.f32 %v243, %v243
          %v263 = vmax.f32 %v262, 1e-05
          %v264 = vrcp.pop %v263
          %v265 = vmul.f32 1.0, %v264
          %v266 = vmul.f32 %v252, %v265
          %vm267 = vcmask 3072
          %v268 = vsel %vm267, %v266, 0.0
          %269 = vadd.xlane.f32.xlu0 %v268
          %v270 = vpop.xlane.xlu0 %269
          %v271 = vrot.slane %v270, 4
          %v272 = vadd.f32 %v270, %v271
          %v273 = vrot.slane %v272, 2
          %v274 = vadd.f32 %v272, %v273
          %v275 = vrot.slane %v274, 1
          %v276 = vadd.f32 %v274, %v275
          %s277 = vtos %v276
          %v278 = vadd.f32 %v261, %v243
          %v279 = vmul.f32 %v278, %v265
          %v280 = vsel %vm267, %v279, 0.0
          %281 = vadd.xlane.f32.xlu0 %v280
          %v282 = vpop.xlane.xlu0 %281
          %v283 = vrot.slane %v282, 4
          %v284 = vadd.f32 %v282, %v283
          %v285 = vrot.slane %v284, 2
          %v286 = vadd.f32 %v284, %v285
          %v287 = vrot.slane %v286, 1
          %v288 = vadd.f32 %v286, %v287
          %s289 = vtos %v288
          %s290 = smax.f32 %s289, 1e-05
          %s291 = smul.f32 %s277, 2.0
          %v292 = vstv %s290
          %v293 = vrcp.pop %v292
          %s294 = vtos %v293
          %s295 = smul.f32 %s291, %s294
          %s296 = ssub.f32 1.0, %s295
          %s297 = scalar_lea.smem [#allocation10], 0
          %298 = sst [smem:[%s297]] %s296
        $region44: #{tpu_custom_call.1} parent=27 // pred_fallthru
          _
        // Predicated region
        $region45: #{tpu_custom_call.1} parent=27 // pred_check
          %p299 = pneg %p101
        $region46: #{tpu_custom_call.1} parent=27 // pred_check_branch
          %301 = sbr.rel (%p299) target = $region48
        $region47: #{tpu_custom_call.1} parent=27 // pred_region
          %s303 = ssub.s32 16, 16
          %304 = vsyncadd [#allocation7], %s303
          %307 = dma.smem_to_hbm [#allocation10], 16, %s2, [#allocation7]
        $region48: #{tpu_custom_call.1} parent=27 // pred_fallthru
          _
        // Predicated region
        $region49: #{tpu_custom_call.1} parent=27 // pred_check
          %p308 = pneg %p101
        $region50: #{tpu_custom_call.1} parent=27 // pred_check_branch
          %310 = sbr.rel (%p308) target = $region52
        $region51: #{tpu_custom_call.1} parent=27 // pred_region
          %311 = dma.done [#allocation7], 16
        $region52: #{tpu_custom_call.1} parent=27 // pred_fallthru
          _
        %312 = sfence
      $region28: #{tpu_custom_call.1} parent=5 // pred_fallthru
        _
      %p313 = scmp.le.s32.totalorder 2, %s15
      // Predicated region
      $region53: #{tpu_custom_call.1} parent=5 // pred_check
        %p314 = pneg %p313
      $region54: #{tpu_custom_call.1} parent=5 // pred_check_branch
        %316 = sbr.rel (%p314) target = $region56
      $region55: #{tpu_custom_call.1} parent=5 // pred_region
        %s317 = ssub.s32 %s15, 2
      $region56: #{tpu_custom_call.1} parent=5 // pred_fallthru
        _
    $region6: #{tpu_custom_call.1} parent=1 // loop_footer
      %s19 = sadd.s32 1, %s15
    $region7: #{tpu_custom_call.1} parent=1 // loop_footer_branch
      %14 = sbr.rel target = $region3
    $region8: #{tpu_custom_call.1} parent=1 // loop_exit
      _
    %318 = vsyncpa [#allocation6], 1
    %s319 = scalar_lea.sflag [#allocation6], 1
    %320 = vsyncpa %s319, 1
    %321 = vsyncpa [#allocation9], 1
    %s322 = scalar_lea.sflag [#allocation9], 1
    %323 = vsyncpa %s322, 1
    %324 = vsyncpa [#allocation7], 1
    %s325 = scalar_lea.sflag [#allocation7], 1
    %326 = vsyncpa %s325, 1

</llo_original>
